<compile_context>
chip_gen: v7x
topology: tpu7x:2x2x1
jax: 0.10.0
libtpu: 0.0.40
codegen_flags: <defaults>
</compile_context>

<pallas_src>
import math
from functools import partial

import jax
import jax.numpy as jnp
from jax.experimental import pallas as pl
from jax.experimental.pallas import tpu as pltpu


# ----------------------------------------------------------------------------
# helpers
# ----------------------------------------------------------------------------
def _round_up(x, m):
    return (x + m - 1) // m * m


def _min_sublane(dtype):
    # minimum second-to-last block dim per dtype packing (f32:8, bf16:16, i8:32)
    return {4: 8, 2: 16, 1: 32}[jnp.dtype(dtype).itemsize]


def _vmem_capacity_bytes():
    # Generation-aware VMEM capacity (128 MiB on v5e/v6e, 64 MiB per TC on v7x).
    try:
        return int(pltpu.get_tpu_info().vmem_capacity_bytes)
    except Exception:
        return 64 << 20  # conservative fallback (v7x per-TC)


def _compiler_params(dimension_semantics, step_bytes, vmem_cap):
    # Double-buffered tile footprint + headroom, capped at 3/4 of physical VMEM
    # (=> ~96 MiB on 128 MiB parts, 48 MiB on v7x's 64 MiB).
    limit = 2 * step_bytes + (8 << 20)
    limit = int(min(max(limit, 32 << 20), (vmem_cap * 3) // 4))
    return pltpu.CompilerParams(dimension_semantics=dimension_semantics,
                                vmem_limit_bytes=limit)


def _pick_decoder_tn(H, V, tm, in_sz, out_sz, vmem_cap):
    """Largest lane-dense vocab tile whose double-buffered footprint fits VMEM."""
    tn_cap = _round_up(V, 128)
    budget = (vmem_cap * 3) // 5  # ~60% of physical VMEM for pipelined buffers
    for cand in (4096, 3072, 2048, 1536, 1024, 512, 256, 128):
        tn = min(cand, tn_cap)
        foot = 2 * (tm * H * in_sz        # streamed activation tile
                    + H * tn * in_sz      # weight slab
                    + tn * 4              # bias (f32)
                    + tm * tn * out_sz)   # output tile
        if foot <= budget:
            return tn
    return min(128, tn_cap)


# ----------------------------------------------------------------------------
# Kernel 1: BertPredictionHeadTransform  (dense + exact GELU + LayerNorm)
# ----------------------------------------------------------------------------
def transform_kernel(x_ref, w_ref, b_ref, gamma_ref, beta_ref, o_ref):
    # MXU matmul in the input dtype (bf16-capable), f32 accumulate.
    h = jnp.dot(x_ref[...], w_ref[...], preferred_element_type=jnp.float32)
    h = h + b_ref[...].astype(jnp.float32)
    # exact (erf-based) GELU, matching torch.nn.GELU() default
    h = 0.5 * h * (1.0 + jax.lax.erf(h * (1.0 / math.sqrt(2.0))))
    # LayerNorm over last dim, eps = 1e-5 (torch default)
    mean = jnp.mean(h, axis=-1, keepdims=True)
    var = jnp.mean(jnp.square(h - mean), axis=-1, keepdims=True)
    h = (h - mean) * jax.lax.rsqrt(var + 1e-5)
    o_ref[...] = (h * gamma_ref[...].astype(jnp.float32)
                  + beta_ref[...].astype(jnp.float32)).astype(o_ref.dtype)


def bert_transform(x2d, w, b, gamma, beta, *, tm, vmem_cap):
    N, H = x2d.shape
    in_sz = jnp.dtype(x2d.dtype).itemsize
    step_bytes = (tm * H * in_sz            # x tile
                  + H * H * in_sz           # weight (constant block -> fetched once)
                  + 3 * H * 4               # bias / gamma / beta
                  + tm * H * in_sz)         # out tile
    return pl.pallas_call(
        transform_kernel,
        out_shape=jax.ShapeDtypeStruct((N, H), x2d.dtype),
        grid_spec=pltpu.PrefetchScalarGridSpec(
            num_scalar_prefetch=0,
            grid=(pl.cdiv(N, tm),),
            in_specs=[
                pl.BlockSpec((tm, H), lambda i: (i, 0)),
                pl.BlockSpec((H, H), lambda i: (0, 0)),  # constant block index
                pl.BlockSpec((1, H), lambda i: (0, 0)),
                pl.BlockSpec((1, H), lambda i: (0, 0)),
                pl.BlockSpec((1, H), lambda i: (0, 0)),
            ],
            out_specs=pl.BlockSpec((tm, H), lambda i: (i, 0)),
        ),
        compiler_params=_compiler_params(("parallel",), step_bytes, vmem_cap),
    )(x2d, w, b.reshape(1, H), gamma.reshape(1, H), beta.reshape(1, H))


# ----------------------------------------------------------------------------
# Kernel 2: decoder (hidden -> vocab) matmul + vocab bias
# ----------------------------------------------------------------------------
def decoder_kernel(h_ref, w_ref, b_ref, o_ref):
    acc = jnp.dot(h_ref[...], w_ref[...], preferred_element_type=jnp.float32)
    o_ref[...] = (acc + b_ref[...].astype(jnp.float32)).astype(o_ref.dtype)


def bert_decoder(h2d, w, b, *, tm, tn, out_dtype, vmem_cap):
    N, H = h2d.shape
    V = w.shape[1]
    in_sz = jnp.dtype(h2d.dtype).itemsize
    out_sz = jnp.dtype(out_dtype).itemsize
    step_bytes = (tm * H * in_sz + H * tn * in_sz + tn * 4 + tm * tn * out_sz)
    return pl.pallas_call(
        decoder_kernel,
        out_shape=jax.ShapeDtypeStruct((N, V), out_dtype),
        grid_spec=pltpu.PrefetchScalarGridSpec(
            num_scalar_prefetch=0,
            # vocab OUTER, token INNER: the [H, tn] weight block index is
            # constant over the inner axis -> stays VMEM-resident; only the
            # small [tm, H] activation tile streams each step.
            grid=(pl.cdiv(V, tn), pl.cdiv(N, tm)),
            in_specs=[
                pl.BlockSpec((tm, H), lambda j, i: (i, 0)),
                pl.BlockSpec((H, tn), lambda j, i: (0, j)),
                pl.BlockSpec((1, tn), lambda j, i: (0, j)),
            ],
            out_specs=pl.BlockSpec((tm, tn), lambda j, i: (i, j)),
        ),
        # vocab axis "parallel" (v7x megacore shards disjoint weight slabs),
        # token axis "arbitrary" (weight stays resident across it).
        compiler_params=_compiler_params(("parallel", "arbitrary"),
                                         step_bytes, vmem_cap),
    )(h2d, w, b.reshape(1, V))


# ----------------------------------------------------------------------------
# Module wrapper
# ----------------------------------------------------------------------------
def init_params(key, hidden_size, vocab_size, dtype=jnp.float32):
    ks = jax.random.split(key, 8)
    s = 0.02
    return {
        # transform dense: stored as [in, out]
        "transform_w": s * jax.random.normal(ks[0], (hidden_size, hidden_size), dtype),
        "transform_b": 0.1 * jax.random.normal(ks[1], (hidden_size,), dtype),
        "ln_gamma": 1.0 + 0.1 * jax.random.normal(ks[2], (hidden_size,), dtype),
        "ln_beta": 0.1 * jax.random.normal(ks[3], (hidden_size,), dtype),
        # decoder: stored as [in, out] = [hidden, vocab]
        "decoder_w": s * jax.random.normal(ks[4], (hidden_size, vocab_size), dtype),
        "decoder_b": 0.1 * jax.random.normal(ks[5], (vocab_size,), dtype),
        # seq_relationship: stored as [in, out] = [hidden, 2]
        "seqrel_w": s * jax.random.normal(ks[6], (hidden_size, 2), dtype),
        "seqrel_b": 0.1 * jax.random.normal(ks[7], (2,), dtype),
    }


def cast_params(params, dtype=jnp.bfloat16):
    """Pre-cast the big matmul weights once, outside the jitted step, so the
    per-call .astype inside the forward becomes a no-op."""
    out = dict(params)
    for k in ("transform_w", "decoder_w", "seqrel_w"):
        out[k] = params[k].astype(dtype)
    return out


def bert_pretraining_heads(params, sequence_output, pooled_output, *,
                           compute_dtype=jnp.bfloat16,
                           tm_transform=512, tm_decoder=256, tn_decoder=None):
    B, S, H = sequence_output.shape
    V = params["decoder_b"].shape[0]
    N = B * S
    out_dtype = sequence_output.dtype
    vmem_cap = _vmem_capacity_bytes()

    # Row tiles: clamp for tiny inputs, keep multiples of the sublane minimum.
    sub = _min_sublane(compute_dtype)
    tm_t = max(sub, min(_round_up(tm_transform, sub), _round_up(N, sub)))
    tm_d = max(sub, min(_round_up(tm_decoder, sub), _round_up(N, sub)))

    in_sz = jnp.dtype(compute_dtype).itemsize
    out_sz = jnp.dtype(out_dtype).itemsize
    if tn_decoder is None:
        tn_d = _pick_decoder_tn(H, V, tm_d, in_sz, out_sz, vmem_cap)
    else:
        tn_d = min(_round_up(tn_decoder, 128), _round_up(V, 128))

    # bf16 (default) matmul operands; f32 accumulation happens in the kernels.
    # (No-op if the caller already stores params / activations in compute_dtype.)
    x2d = sequence_output.reshape(N, H).astype(compute_dtype)
    w_t = params["transform_w"].astype(compute_dtype)
    w_d = params["decoder_w"].astype(compute_dtype)

    h = bert_transform(x2d, w_t, params["transform_b"],
                       params["ln_gamma"], params["ln_beta"],
                       tm=tm_t, vmem_cap=vmem_cap)

    logits = bert_decoder(h, w_d, params["decoder_b"],
                          tm=tm_d, tn=tn_d, out_dtype=out_dtype,
                          vmem_cap=vmem_cap)
    prediction_scores = logits.reshape(B, S, V)  # free: logits is exactly (N, V)

    # seq_relationship head ([B,H] @ [H,2] + b): left to XLA (2-wide Pallas
    # output => masked stores + extra launch). Bias added on the f32
    # accumulator before the downcast (torch op order).
    seq_relationship_scores = (
        jnp.dot(pooled_output.astype(compute_dtype),
                params["seqrel_w"].astype(compute_dtype),
                preferred_element_type=jnp.float32)
        + params["seqrel_b"].astype(jnp.float32)
    ).astype(pooled_output.dtype)

    return prediction_scores, seq_relationship_scores


# ----------------------------------------------------------------------------
# Pure-JAX reference for correctness
# ----------------------------------------------------------------------------
def reference_forward(params, sequence_output, pooled_output):
    h = sequence_output @ params["transform_w"] + params["transform_b"]
    h = 0.5 * h * (1.0 + jax.lax.erf(h / jnp.sqrt(2.0)))
    mean = jnp.mean(h, axis=-1, keepdims=True)
    var = jnp.mean((h - mean) ** 2, axis=-1, keepdims=True)
    h = (h - mean) / jnp.sqrt(var + 1e-5)
    h = h * params["ln_gamma"] + params["ln_beta"]
    pred = h @ params["decoder_w"] + params["decoder_b"]
    seqrel = pooled_output @ params["seqrel_w"] + params["seqrel_b"]
    return pred, seqrel


if __name__ == "__main__":
    # Small shapes. N = B*S = 14 and V = 250 are deliberately NOT tile
    # multiples so the cdiv / partial-trailing-block path is exercised.
    B, S, H, V = 2, 7, 128, 250

    key = jax.random.PRNGKey(0)
    k_params, k_seq, k_pool = jax.random.split(key, 3)

    params = init_params(k_params, H, V)
    sequence_output = jax.random.normal(k_seq, (B, S, H), jnp.float32)
    pooled_output = jax.random.normal(k_pool, (B, H), jnp.float32)

    ref_pred, ref_seqrel = reference_forward(params, sequence_output, pooled_output)

    # 1) exact-semantics check: f32 matmul operands, tight tolerance.
    f32_fwd = jax.jit(partial(bert_pretraining_heads, compute_dtype=jnp.float32))
    pred32, seqrel32 = f32_fwd(params, sequence_output, pooled_output)
    jax.block_until_ready((pred32, seqrel32))
    assert pred32.shape == (B, S, V) and seqrel32.shape == (B, 2)
    assert jnp.allclose(pred32, ref_pred, atol=1e-4, rtol=1e-4)
    assert jnp.allclose(seqrel32, ref_seqrel, atol=1e-4, rtol=1e-4)

    # 2) default fast path: bf16 matmul operands, f32 accumulation.
    bf16_fwd = jax.jit(bert_pretraining_heads)
    pred16, seqrel16 = bf16_fwd(params, sequence_output, pooled_output)
    jax.block_until_ready((pred16, seqrel16))
    assert pred16.shape == (B, S, V) and seqrel16.shape == (B, 2)
    assert jnp.allclose(pred16, ref_pred, atol=5e-2, rtol=5e-2)
    assert jnp.allclose(seqrel16, ref_seqrel, atol=5e-2, rtol=5e-2)

    print("KERNEL_OK")
</pallas_src>

<mosaic_0001>
module attributes {stable_mosaic.version = 11 : i64} {
  func.func @decoder_kernel(%arg0: i32, %arg1: i32, %arg2: memref<16x128xf32, #tpu.memory_space<vmem>>, %arg3: memref<128x256xf32, #tpu.memory_space<vmem>>, %arg4: memref<1x256xf32, #tpu.memory_space<vmem>>, %arg5: memref<16x256xf32, #tpu.memory_space<vmem>>) attributes {dimension_semantics = [#tpu.dimension_semantics<parallel>, #tpu.dimension_semantics<arbitrary>], iteration_bounds = array<i64: 1, 1>, scalar_prefetch = 0 : i64, scratch_operands = 0 : i64, tpu.core_type = #tpu.core_type<tc>, window_params = [{transform_indices = @transform_0, window_bounds = array<i64: 16, 128>}, {transform_indices = @transform_1, window_bounds = array<i64: 128, 256>}, {transform_indices = @transform_2, window_bounds = array<i64: 1, 256>}, {transform_indices = @transform_3, window_bounds = array<i64: 16, 256>}]} {
    %c0 = arith.constant 0 : index
    %c0_0 = arith.constant 0 : index
    %0 = vector.load %arg2[%c0, %c0_0] : memref<16x128xf32, #tpu.memory_space<vmem>>, vector<16x128xf32>
    %c0_1 = arith.constant 0 : index
    %c0_2 = arith.constant 0 : index
    %1 = vector.load %arg3[%c0_1, %c0_2] : memref<128x256xf32, #tpu.memory_space<vmem>>, vector<128x256xf32>
    %cst = arith.constant dense<0.000000e+00> : vector<16x256xf32>
    %2 = tpu.matmul %0, %1, %cst {dimension_numbers = #tpu.dot_dimension_numbers<[1], [0], [0], [1], [0, 0, 1, 1], [], []>} : vector<16x128xf32>, vector<128x256xf32>, vector<16x256xf32> -> vector<16x256xf32>
    %c0_3 = arith.constant 0 : index
    %c0_4 = arith.constant 0 : index
    %3 = vector.load %arg4[%c0_3, %c0_4] : memref<1x256xf32, #tpu.memory_space<vmem>>, vector<1x256xf32>
    %4 = vector.broadcast %3 : vector<1x256xf32> to vector<16x256xf32>
    %5 = arith.addf %2, %4 : vector<16x256xf32>
    %c0_5 = arith.constant 0 : index
    %c0_6 = arith.constant 0 : index
    %6 = vector.load %arg5[%c0_5, %c0_6] : memref<16x256xf32, #tpu.memory_space<vmem>>, vector<16x256xf32>
    tpu.vector_store %arg5[%c0_5, %c0_6], %5 {strides = array<i32>} : memref<16x256xf32, #tpu.memory_space<vmem>>, vector<16x256xf32>,
    return
  }
  func.func @transform_0(%arg0: i32, %arg1: i32) -> (i32, i32) {
    %c0_i32 = arith.constant 0 : i32
    %c0_i32_0 = arith.constant 0 : i32
    return %arg1, %c0_i32 : i32, i32
  }
  func.func @transform_1(%arg0: i32, %arg1: i32) -> (i32, i32) {
    %c0_i32 = arith.constant 0 : i32
    %c0_i32_0 = arith.constant 0 : i32
    return %c0_i32, %arg0 : i32, i32
  }
  func.func @transform_2(%arg0: i32, %arg1: i32) -> (i32, i32) {
    %c0_i32 = arith.constant 0 : i32
    %c0_i32_0 = arith.constant 0 : i32
    return %c0_i32, %arg0 : i32, i32
  }
  func.func @transform_3(%arg0: i32, %arg1: i32) -> (i32, i32) {
    %c0_i32 = arith.constant 0 : i32
    return %arg1, %arg0 : i32, i32
  }
}

module attributes {stable_mosaic.version = 11 : i64} {
  func.func @transform_kernel(%arg0: i32, %arg1: memref<16x128xf32, #tpu.memory_space<vmem>>, %arg2: memref<128x128xf32, #tpu.memory_space<vmem>>, %arg3: memref<1x128xf32, #tpu.memory_space<vmem>>, %arg4: memref<1x128xf32, #tpu.memory_space<vmem>>, %arg5: memref<1x128xf32, #tpu.memory_space<vmem>>, %arg6: memref<16x128xf32, #tpu.memory_space<vmem>>) attributes {dimension_semantics = [#tpu.dimension_semantics<parallel>], iteration_bounds = array<i64: 1>, scalar_prefetch = 0 : i64, scratch_operands = 0 : i64, tpu.core_type = #tpu.core_type<tc>, window_params = [{transform_indices = @transform_0, window_bounds = array<i64: 16, 128>}, {pipeline_mode = #tpu.pipeline_mode<synchronous>, transform_indices = @transform_1, window_bounds = array<i64: 128, 128>}, {pipeline_mode = #tpu.pipeline_mode<synchronous>, transform_indices = @transform_2, window_bounds = array<i64: 1, 128>}, {pipeline_mode = #tpu.pipeline_mode<synchronous>, transform_indices = @transform_3, window_bounds = array<i64: 1, 128>}, {pipeline_mode = #tpu.pipeline_mode<synchronous>, transform_indices = @transform_4, window_bounds = array<i64: 1, 128>}, {transform_indices = @transform_5, window_bounds = array<i64: 16, 128>}]} {
    %c0 = arith.constant 0 : index
    %c0_0 = arith.constant 0 : index
    %0 = vector.load %arg1[%c0, %c0_0] : memref<16x128xf32, #tpu.memory_space<vmem>>, vector<16x128xf32>
    %c0_1 = arith.constant 0 : index
    %c0_2 = arith.constant 0 : index
    %1 = vector.load %arg2[%c0_1, %c0_2] : memref<128x128xf32, #tpu.memory_space<vmem>>, vector<128x128xf32>
    %cst = arith.constant dense<0.000000e+00> : vector<16x128xf32>
    %2 = tpu.matmul %0, %1, %cst {dimension_numbers = #tpu.dot_dimension_numbers<[1], [0], [0], [1], [0, 0, 1, 1], [], []>} : vector<16x128xf32>, vector<128x128xf32>, vector<16x128xf32> -> vector<16x128xf32>
    %c0_3 = arith.constant 0 : index
    %c0_4 = arith.constant 0 : index
    %3 = vector.load %arg3[%c0_3, %c0_4] : memref<1x128xf32, #tpu.memory_space<vmem>>, vector<1x128xf32>
    %4 = vector.broadcast %3 : vector<1x128xf32> to vector<16x128xf32>
    %5 = arith.addf %2, %4 : vector<16x128xf32>
    %cst_5 = arith.constant 5.000000e-01 : f32
    %6 = vector.broadcast %cst_5 : f32 to vector<16x128xf32>
    %7 = arith.mulf %6, %5 : vector<16x128xf32>
    %cst_6 = arith.constant 0.707106769 : f32
    %8 = vector.broadcast %cst_6 : f32 to vector<16x128xf32>
    %9 = arith.mulf %5, %8 : vector<16x128xf32>
    %10 = math.erf %9 : vector<16x128xf32>
    %cst_7 = arith.constant 1.000000e+00 : f32
    %11 = vector.broadcast %cst_7 : f32 to vector<16x128xf32>
    %12 = arith.addf %11, %10 : vector<16x128xf32>
    %13 = arith.mulf %7, %12 : vector<16x128xf32>
    %cst_8 = arith.constant dense<0.000000e+00> : vector<16xf32>
    %14 = vector.multi_reduction <add>, %13, %cst_8 [1] : vector<16x128xf32> to vector<16xf32>
    %15 = vector.shape_cast %14 : vector<16xf32> to vector<16x1xf32>
    %cst_9 = arith.constant 1.280000e+02 : f32
    %16 = vector.broadcast %cst_9 : f32 to vector<16x1xf32>
    %17 = arith.divf %15, %16 : vector<16x1xf32>
    %18 = vector.broadcast %17 : vector<16x1xf32> to vector<16x128xf32>
    %19 = arith.subf %13, %18 : vector<16x128xf32>
    %20 = arith.mulf %19, %19 : vector<16x128xf32>
    %cst_10 = arith.constant dense<0.000000e+00> : vector<16xf32>
    %21 = vector.multi_reduction <add>, %20, %cst_10 [1] : vector<16x128xf32> to vector<16xf32>
    %22 = vector.shape_cast %21 : vector<16xf32> to vector<16x1xf32>
    %cst_11 = arith.constant 1.280000e+02 : f32
    %23 = vector.broadcast %cst_11 : f32 to vector<16x1xf32>
    %24 = arith.divf %22, %23 : vector<16x1xf32>
    %25 = vector.broadcast %17 : vector<16x1xf32> to vector<16x128xf32>
    %26 = arith.subf %13, %25 : vector<16x128xf32>
    %cst_12 = arith.constant 9.99999974E-6 : f32
    %27 = vector.broadcast %cst_12 : f32 to vector<16x1xf32>
    %28 = arith.addf %24, %27 : vector<16x1xf32>
    %29 = math.rsqrt %28 : vector<16x1xf32>
    %30 = vector.broadcast %29 : vector<16x1xf32> to vector<16x128xf32>
    %31 = arith.mulf %26, %30 : vector<16x128xf32>
    %c0_13 = arith.constant 0 : index
    %c0_14 = arith.constant 0 : index
    %32 = vector.load %arg4[%c0_13, %c0_14] : memref<1x128xf32, #tpu.memory_space<vmem>>, vector<1x128xf32>
    %33 = vector.broadcast %32 : vector<1x128xf32> to vector<16x128xf32>
    %34 = arith.mulf %31, %33 : vector<16x128xf32>
    %c0_15 = arith.constant 0 : index
    %c0_16 = arith.constant 0 : index
    %35 = vector.load %arg5[%c0_15, %c0_16] : memref<1x128xf32, #tpu.memory_space<vmem>>, vector<1x128xf32>
    %36 = vector.broadcast %35 : vector<1x128xf32> to vector<16x128xf32>
    %37 = arith.addf %34, %36 : vector<16x128xf32>
    %c0_17 = arith.constant 0 : index
    %c0_18 = arith.constant 0 : index
    %38 = vector.load %arg6[%c0_17, %c0_18] : memref<16x128xf32, #tpu.memory_space<vmem>>, vector<16x128xf32>
    tpu.vector_store %arg6[%c0_17, %c0_18], %37 {strides = array<i32>} : memref<16x128xf32, #tpu.memory_space<vmem>>, vector<16x128xf32>,
    return
  }
  func.func @transform_0(%arg0: i32) -> (i32, i32) {
    %c0_i32 = arith.constant 0 : i32
    %c0_i32_0 = arith.constant 0 : i32
    return %arg0, %c0_i32 : i32, i32
  }
  func.func @transform_1(%arg0: i32) -> (i32, i32) {
    %c0_i32 = arith.constant 0 : i32
    %c0_i32_0 = arith.constant 0 : i32
    %c0_i32_1 = arith.constant 0 : i32
    return %c0_i32, %c0_i32_0 : i32, i32
  }
  func.func @transform_2(%arg0: i32) -> (i32, i32) {
    %c0_i32 = arith.constant 0 : i32
    %c0_i32_0 = arith.constant 0 : i32
    %c0_i32_1 = arith.constant 0 : i32
    return %c0_i32, %c0_i32_0 : i32, i32
  }
  func.func @transform_3(%arg0: i32) -> (i32, i32) {
    %c0_i32 = arith.constant 0 : i32
    %c0_i32_0 = arith.constant 0 : i32
    %c0_i32_1 = arith.constant 0 : i32
    return %c0_i32, %c0_i32_0 : i32, i32
  }
  func.func @transform_4(%arg0: i32) -> (i32, i32) {
    %c0_i32 = arith.constant 0 : i32
    %c0_i32_0 = arith.constant 0 : i32
    %c0_i32_1 = arith.constant 0 : i32
    return %c0_i32, %c0_i32_0 : i32, i32
  }
  func.func @transform_5(%arg0: i32) -> (i32, i32) {
    %c0_i32 = arith.constant 0 : i32
    %c0_i32_0 = arith.constant 0 : i32
    return %arg0, %c0_i32 : i32, i32
  }
}

</mosaic_0001>

<llo_original>
// kernel: bert_pretraining_heads.2
$region0: #{bert_pretraining_heads.2}
  #allocation0 [shape = 'u32[]', space=smem, size = 0x4, offset = 0x4, fixed_abs, tag = 'smem constant byte address 0x4 - core index']
  #allocation1 [shape = 'u32[144,128]{1,0:T(1,128)}', space=vmem, size = 0x12000, scoped, tag = 'internal scratch']
  %s0 = inlined_call_operand.vmem [shape: f32[14,128], index: 0, kind: input, shape index: {}]
  %s1 = inlined_call_operand.hbm [shape: f32[128,128], index: 1, kind: input, shape index: {}]
  %s2 = inlined_call_operand.vmem [shape: f32[1,128], index: 2, kind: input, shape index: {}]
  %s3 = inlined_call_operand.vmem [shape: f32[1,128], index: 3, kind: input, shape index: {}]
  %s4 = inlined_call_operand.vmem [shape: f32[1,128], index: 4, kind: input, shape index: {}]
  %s5 = inlined_call_operand.vmem [shape: f32[14,128], index: 5, kind: output, shape index: {}]
  %s6 = sld [smem:[#allocation0]]
  $region34: #{bert_pretraining_heads.2} parent=0
    _
  %s8 = ssub.s32 1, %s6
  %s9 = scalar_select 0, %s8, %s6
  $region1: #{bert_pretraining_heads.2} parent=0
    #allocation2 [shape = 'u8[65536]{0}', space=vmem, size = 0x10000, scoped, tag = 'input window, operand 1, single buffered']
    #allocation3 [shape = 's32[1]{0}', space=sflag, size = 0x4, scoped, tag = 'scoped memory for bert_pretraining_heads.2']
    %10 = vsyncpa [#allocation3], 0
    // Predicated region
    $region2: #{bert_pretraining_heads.2} parent=1 // pred_check
      _
    $region3: #{bert_pretraining_heads.2} parent=1 // pred_check_branch
      %12 = sbr.rel (0) target = $region5
    $region4: #{bert_pretraining_heads.2} parent=1 // pred_region
      _
    $region5: #{bert_pretraining_heads.2} parent=1 // pred_fallthru
      _
    // Predicated region
    $region6: #{bert_pretraining_heads.2} parent=1 // pred_check
      _
    $region7: #{bert_pretraining_heads.2} parent=1 // pred_check_branch
      %14 = sbr.rel (0) target = $region9
    $region8: #{bert_pretraining_heads.2} parent=1 // pred_region
      %s16 = ssub.s32 2048, 2048
      %17 = vsyncadd [#allocation3], %s16
      %s18 = sshll.u32 [#allocation2], 4
      %s19 = int_to_ptr.vmem [resolvable:$true] %s18
      %24 = dma.hbm_to_vmem [thread:$0]  %s1, 2048, %s19, [#allocation3], 128, 128, 8
    $region9: #{bert_pretraining_heads.2} parent=1 // pred_fallthru
      _
    // Predicated region
    $region10: #{bert_pretraining_heads.2} parent=1 // pred_check
      _
    $region11: #{bert_pretraining_heads.2} parent=1 // pred_check_branch
      %26 = sbr.rel (0) target = $region13
    $region12: #{bert_pretraining_heads.2} parent=1 // pred_region
      _
    $region13: #{bert_pretraining_heads.2} parent=1 // pred_fallthru
      _
    // Predicated region
    $region14: #{bert_pretraining_heads.2} parent=1 // pred_check
      _
    $region15: #{bert_pretraining_heads.2} parent=1 // pred_check_branch
      %28 = sbr.rel (0) target = $region17
    $region16: #{bert_pretraining_heads.2} parent=1 // pred_region
      _
    $region17: #{bert_pretraining_heads.2} parent=1 // pred_fallthru
      _
    // Predicated region
    $region18: #{bert_pretraining_heads.2} parent=1 // pred_check
      _
    $region19: #{bert_pretraining_heads.2} parent=1 // pred_check_branch
      %30 = sbr.rel (0) target = $region21
    $region20: #{bert_pretraining_heads.2} parent=1 // pred_region
      _
    $region21: #{bert_pretraining_heads.2} parent=1 // pred_fallthru
      _
    // Predicated region
    $region22: #{bert_pretraining_heads.2} parent=1 // pred_check
      _
    $region23: #{bert_pretraining_heads.2} parent=1 // pred_check_branch
      %32 = sbr.rel (0) target = $region25
    $region24: #{bert_pretraining_heads.2} parent=1 // pred_region
      %33 = dma.done [#allocation3], 2048
    $region25: #{bert_pretraining_heads.2} parent=1 // pred_fallthru
      _
    %v34 = vld [vmem:[%s0] sm:$0xff]
    %v35 = vld [vmem:[%s0 + $0x8] sm:$0xff]
    %v36 = vld [vmem:[#allocation2] sm:$0xff]
    %v37 = vld [vmem:[#allocation2 + $0x8] sm:$0xff]
    %v38 = vld [vmem:[#allocation2 + $0x10] sm:$0xff]
    %v39 = vld [vmem:[#allocation2 + $0x18] sm:$0xff]
    %v40 = vld [vmem:[#allocation2 + $0x20] sm:$0xff]
    %v41 = vld [vmem:[#allocation2 + $0x28] sm:$0xff]
    %v42 = vld [vmem:[#allocation2 + $0x30] sm:$0xff]
    %v43 = vld [vmem:[#allocation2 + $0x38] sm:$0xff]
    %v44 = vld [vmem:[#allocation2 + $0x40] sm:$0xff]
    %v45 = vld [vmem:[#allocation2 + $0x48] sm:$0xff]
    %v46 = vld [vmem:[#allocation2 + $0x50] sm:$0xff]
    %v47 = vld [vmem:[#allocation2 + $0x58] sm:$0xff]
    %v48 = vld [vmem:[#allocation2 + $0x60] sm:$0xff]
    %v49 = vld [vmem:[#allocation2 + $0x68] sm:$0xff]
    %v50 = vld [vmem:[#allocation2 + $0x70] sm:$0xff]
    %v51 = vld [vmem:[#allocation2 + $0x78] sm:$0xff]
    %v52 = vld [vmem:[%s2] sm:$0x1]
    %v54 = vlaneseq
    %v55 = vshrl.u32 %v54, 7
    %v56 = vsub.s32 0, %v55
    %v57 = vrot.slane %v52, %v56
    %59 = vmatprep.subr.mxu0 0.0
    %60 = vmatpush1.msra.mxu0 %v36
    %61 = vmatprep.subr.mxu0 0.0
    %62 = vmatpush1.msra.mxu0 %v37
    %63 = vmatprep.subr.mxu0 0.0
    %64 = vmatpush1.msra.mxu0 %v38
    %65 = vmatprep.subr.mxu0 0.0
    %66 = vmatpush1.msra.mxu0 %v39
    %67 = vmatprep.subr.mxu0 0.0
    %68 = vmatpush1.msra.mxu0 %v40
    %69 = vmatprep.subr.mxu0 0.0
    %70 = vmatpush1.msra.mxu0 %v41
    %71 = vmatprep.subr.mxu0 0.0
    %72 = vmatpush1.msra.mxu0 %v42
    %73 = vmatprep.subr.mxu0 0.0
    %74 = vmatpush1.msra.mxu0 %v43
    %75 = vmatprep.subr.mxu0 0.0
    %76 = vmatpush1.msra.mxu0 %v44
    %77 = vmatprep.subr.mxu0 0.0
    %78 = vmatpush1.msra.mxu0 %v45
    %79 = vmatprep.subr.mxu0 0.0
    %80 = vmatpush1.msra.mxu0 %v46
    %81 = vmatprep.subr.mxu0 0.0
    %82 = vmatpush1.msra.mxu0 %v47
    %83 = vmatprep.subr.mxu0 0.0
    %84 = vmatpush1.msra.mxu0 %v48
    %85 = vmatprep.subr.mxu0 0.0
    %86 = vmatpush1.msra.mxu0 %v49
    %87 = vmatprep.subr.mxu0 0.0
    %88 = vmatpush1.msra.mxu0 %v50
    %89 = vmatprep.subr.mxu0 0.0
    %90 = vmatpush1.msra.mxu0 %v51
    %91 = vmatprep.subr.mxu0 0.0
    %92 = vmatpush1.msra.mxu0 0.0
    %93 = vmatprep.subr.mxu0 0.0
    %94 = vmatpush1.msra.mxu0 0.0
    %95 = vmatprep.subr.mxu0 0.0
    %96 = vmatpush1.msra.mxu0 0.0
    %97 = vmatprep.subr.mxu0 0.0
    %98 = vmatpush1.msra.mxu0 0.0
    %99 = vmatprep.subr.mxu0 0.0
    %100 = vmatpush1.msra.mxu0 0.0
    %101 = vmatprep.subr.mxu0 0.0
    %102 = vmatpush1.msra.mxu0 0.0
    %103 = vmatprep.subr.mxu0 0.0
    %104 = vmatpush1.msra.mxu0 0.0
    %105 = vmatprep.subr.mxu0 0.0
    %106 = vmatpush1.msra.mxu0 0.0
    %107 = vmatprep.subr.mxu0 0.0
    %108 = vmatpush1.msra.mxu0 0.0
    %109 = vmatprep.subr.mxu0 0.0
    %110 = vmatpush1.msra.mxu0 0.0
    %111 = vmatprep.subr.mxu0 0.0
    %112 = vmatpush1.msra.mxu0 0.0
    %113 = vmatprep.subr.mxu0 0.0
    %114 = vmatpush1.msra.mxu0 0.0
    %115 = vmatprep.subr.mxu0 0.0
    %116 = vmatpush1.msra.mxu0 0.0
    %117 = vmatprep.subr.mxu0 0.0
    %118 = vmatpush1.msra.mxu0 0.0
    %119 = vmatprep.subr.mxu0 0.0
    %120 = vmatpush1.msra.mxu0 0.0
    %121 = vmatprep.subr.mxu0 0.0
    %122 = vmatpush1.msra.mxu0 0.0
    %123 = vmatprep.mubr.f32.mxu0 0.0
    %124 = vmatmul.mubr.f32.gmra.mrb[0].mxu0 %v34
    %v125 = vpop.f32.mrb[0].mxu0
    %v126 = vadd.f32 %v57, %v125
    %v127 = vpop.f32.mrb[0].mxu0
    %128 = vmatprep.mubr.f32.mxu0 0.0
    %129 = vmatmul.mubr.f32.gmra.mrb[0].mxu0 %v35
    %v130 = vpop.f32.mrb[0].mxu0
    %v131 = vadd.f32 %v57, %v130
    %v132 = vpop.f32.mrb[0].mxu0
    %133 = vdwg.mxu0
    %v134 = vmul.f32 %v126, 0.5
    %v135 = vmul.f32 %v131, 0.5
    %v136 = vmul.f32 %v126, 0.70710677
    %v137 = vmul.f32 %v131, 0.70710677
    %v138 = verf.f32.pop %v136
    %v139 = verf.f32.pop %v137
    %v140 = vadd.f32 %v138, 1.0
    %v141 = vadd.f32 %v139, 1.0
    %v142 = vmul.f32 %v134, %v140
    %v143 = vmul.f32 %v135, %v141
    %144 = vadd.xlane.f32.xlu0 %v142
    %v145 = vpop.xlane.xlu0 %144
    %146 = vadd.xlane.f32.xlu0 %v143
    %v147 = vpop.xlane.xlu0 %146
    %v148 = vrcp.pop 128.0
    %v149 = vmul.f32 %v145, %v148
    %v150 = vmul.f32 %v147, %v148
    %v151 = vsub.f32 %v142, %v149
    %v152 = vsub.f32 %v143, %v150
    %v153 = vmul.f32 %v151, %v151
    %v154 = vmul.f32 %v152, %v152
    %155 = vadd.xlane.f32.xlu0 %v153
    %v156 = vpop.xlane.xlu0 %155
    %157 = vadd.xlane.f32.xlu0 %v154
    %v158 = vpop.xlane.xlu0 %157
    %v159 = vmul.f32 %v156, %v148
    %v160 = vmul.f32 %v158, %v148
    %v161 = vadd.f32 %v159, 1e-05
    %v162 = vadd.f32 %v160, 1e-05
    %v163 = vrsqrt.pop %v161
    %v164 = vrsqrt.pop %v162
    %v165 = vmul.f32 %v151, %v163
    %v166 = vmul.f32 %v152, %v164
    %v167 = vld [vmem:[%s3] sm:$0x1]
    %v169 = vlaneseq
    %v170 = vshrl.u32 %v169, 7
    %v171 = vsub.s32 0, %v170
    %v172 = vrot.slane %v167, %v171
    %v174 = vmul.f32 %v165, %v172
    %v175 = vmul.f32 %v166, %v172
    %v176 = vld [vmem:[%s4] sm:$0x1]
    %v178 = vlaneseq
    %v179 = vshrl.u32 %v178, 7
    %v180 = vsub.s32 0, %v179
    %v181 = vrot.slane %v176, %v180
    %v183 = vadd.f32 %v174, %v181
    %v184 = vadd.f32 %v175, %v181
    %185 = vst [vmem:[%s5] sm:$0xff] %v183
    %186 = vst [vmem:[%s5 + $0x8] sm:$0xff] %v184
    // Predicated region
    $region26: #{bert_pretraining_heads.2} parent=1 // pred_check
      _
    $region27: #{bert_pretraining_heads.2} parent=1 // pred_check_branch
      %188 = sbr.rel (0) target = $region29
    $region28: #{bert_pretraining_heads.2} parent=1 // pred_region
      _
    $region29: #{bert_pretraining_heads.2} parent=1 // pred_fallthru
      _
    // Predicated region
    $region30: #{bert_pretraining_heads.2} parent=1 // pred_check
      _
    $region31: #{bert_pretraining_heads.2} parent=1 // pred_check_branch
      %190 = sbr.rel (0) target = $region33
    $region32: #{bert_pretraining_heads.2} parent=1 // pred_region
      _
    $region33: #{bert_pretraining_heads.2} parent=1 // pred_fallthru
      _
    %191 = vsyncpa [#allocation3], 1

// kernel: bert_pretraining_heads.3
$region0: #{bert_pretraining_heads.3}
  #allocation0 [shape = 'u32[]', space=smem, size = 0x4, offset = 0x4, fixed_abs, tag = 'smem constant byte address 0x4 - core index']
  #allocation1 [shape = 'u32[144,128]{1,0:T(1,128)}', space=vmem, size = 0x12000, scoped, tag = 'internal scratch']
  %s0 = inlined_call_operand.vmem [shape: f32[14,128], index: 0, kind: input, shape index: {}]
  %s1 = inlined_call_operand.hbm [shape: f32[128,250], index: 1, kind: input, shape index: {}]
  %s2 = inlined_call_operand.vmem [shape: f32[1,250], index: 2, kind: input, shape index: {}]
  %s3 = inlined_call_operand.vmem [shape: f32[14,250], index: 3, kind: output, shape index: {}]
  %s4 = sld [smem:[#allocation0]]
  $region26: #{bert_pretraining_heads.3} parent=0
    _
  %s6 = ssub.s32 1, %s4
  %s7 = scalar_select 0, %s6, %s4
  $region1: #{bert_pretraining_heads.3} parent=0
    #allocation2 [shape = 'u8[131072]{0}', space=vmem, size = 0x20000, scoped, tag = 'input window, operand 1, single buffered']
    #allocation3 [shape = 's32[1]{0}', space=sflag, size = 0x4, scoped, tag = 'scoped memory for bert_pretraining_heads.3']
    %8 = vsyncpa [#allocation3], 0
    // Predicated region
    $region2: #{bert_pretraining_heads.3} parent=1 // pred_check
      _
    $region3: #{bert_pretraining_heads.3} parent=1 // pred_check_branch
      %10 = sbr.rel (0) target = $region5
    $region4: #{bert_pretraining_heads.3} parent=1 // pred_region
      _
    $region5: #{bert_pretraining_heads.3} parent=1 // pred_fallthru
      _
    // Predicated region
    $region6: #{bert_pretraining_heads.3} parent=1 // pred_check
      _
    $region7: #{bert_pretraining_heads.3} parent=1 // pred_check_branch
      %12 = sbr.rel (0) target = $region9
    $region8: #{bert_pretraining_heads.3} parent=1 // pred_region
      %s14 = ssub.s32 4096, 4096
      %15 = vsyncadd [#allocation3], %s14
      %s16 = sshll.u32 [#allocation2], 4
      %s17 = int_to_ptr.vmem [resolvable:$true] %s16
      %22 = dma.hbm_to_vmem [thread:$0]  %s1, 4096, %s17, [#allocation3], 256, 256, 16
    $region9: #{bert_pretraining_heads.3} parent=1 // pred_fallthru
      _
    // Predicated region
    $region10: #{bert_pretraining_heads.3} parent=1 // pred_check
      _
    $region11: #{bert_pretraining_heads.3} parent=1 // pred_check_branch
      %24 = sbr.rel (0) target = $region13
    $region12: #{bert_pretraining_heads.3} parent=1 // pred_region
      _
    $region13: #{bert_pretraining_heads.3} parent=1 // pred_fallthru
      _
    // Predicated region
    $region14: #{bert_pretraining_heads.3} parent=1 // pred_check
      _
    $region15: #{bert_pretraining_heads.3} parent=1 // pred_check_branch
      %26 = sbr.rel (0) target = $region17
    $region16: #{bert_pretraining_heads.3} parent=1 // pred_region
      %27 = dma.done [#allocation3], 4096
    $region17: #{bert_pretraining_heads.3} parent=1 // pred_fallthru
      _
    %v28 = vld [vmem:[%s0] sm:$0xff]
    %v29 = vld [vmem:[%s0 + $0x8] sm:$0xff]
    %v30 = vld [vmem:[#allocation2] sm:$0xff]
    %v31 = vld [vmem:[#allocation2 + $0x8] sm:$0xff]
    %v32 = vld [vmem:[#allocation2 + $0x10] sm:$0xff]
    %v33 = vld [vmem:[#allocation2 + $0x18] sm:$0xff]
    %v34 = vld [vmem:[#allocation2 + $0x20] sm:$0xff]
    %v35 = vld [vmem:[#allocation2 + $0x28] sm:$0xff]
    %v36 = vld [vmem:[#allocation2 + $0x30] sm:$0xff]
    %v37 = vld [vmem:[#allocation2 + $0x38] sm:$0xff]
    %v38 = vld [vmem:[#allocation2 + $0x40] sm:$0xff]
    %v39 = vld [vmem:[#allocation2 + $0x48] sm:$0xff]
    %v40 = vld [vmem:[#allocation2 + $0x50] sm:$0xff]
    %v41 = vld [vmem:[#allocation2 + $0x58] sm:$0xff]
    %v42 = vld [vmem:[#allocation2 + $0x60] sm:$0xff]
    %v43 = vld [vmem:[#allocation2 + $0x68] sm:$0xff]
    %v44 = vld [vmem:[#allocation2 + $0x70] sm:$0xff]
    %v45 = vld [vmem:[#allocation2 + $0x78] sm:$0xff]
    %v46 = vld [vmem:[#allocation2 + $0x80] sm:$0xff]
    %v47 = vld [vmem:[#allocation2 + $0x88] sm:$0xff]
    %v48 = vld [vmem:[#allocation2 + $0x90] sm:$0xff]
    %v49 = vld [vmem:[#allocation2 + $0x98] sm:$0xff]
    %v50 = vld [vmem:[#allocation2 + $0xa0] sm:$0xff]
    %v51 = vld [vmem:[#allocation2 + $0xa8] sm:$0xff]
    %v52 = vld [vmem:[#allocation2 + $0xb0] sm:$0xff]
    %v53 = vld [vmem:[#allocation2 + $0xb8] sm:$0xff]
    %v54 = vld [vmem:[#allocation2 + $0xc0] sm:$0xff]
    %v55 = vld [vmem:[#allocation2 + $0xc8] sm:$0xff]
    %v56 = vld [vmem:[#allocation2 + $0xd0] sm:$0xff]
    %v57 = vld [vmem:[#allocation2 + $0xd8] sm:$0xff]
    %v58 = vld [vmem:[#allocation2 + $0xe0] sm:$0xff]
    %v59 = vld [vmem:[#allocation2 + $0xe8] sm:$0xff]
    %v60 = vld [vmem:[#allocation2 + $0xf0] sm:$0xff]
    %v61 = vld [vmem:[#allocation2 + $0xf8] sm:$0xff]
    %v62 = vld [vmem:[%s2] sm:$0x3]
    %v64 = vlaneseq
    %v65 = vshrl.u32 %v64, 7
    %v66 = vsub.s32 0, %v65
    %v67 = vrot.slane %v62, %v66
    %v68 = vlaneseq
    %v69 = vshrl.u32 %v68, 7
    %v70 = vsub.s32 1, %v69
    %v71 = vrot.slane %v62, %v70
    %74 = vmatprep.subr.mxu0 %v31
    %75 = vmatpush1.msra.mxu0 %v30
    %76 = vmatprep.subr.mxu0 %v33
    %77 = vmatpush1.msra.mxu0 %v32
    %78 = vmatprep.subr.mxu0 %v35
    %79 = vmatpush1.msra.mxu0 %v34
    %80 = vmatprep.subr.mxu0 %v37
    %81 = vmatpush1.msra.mxu0 %v36
    %82 = vmatprep.subr.mxu0 %v39
    %83 = vmatpush1.msra.mxu0 %v38
    %84 = vmatprep.subr.mxu0 %v41
    %85 = vmatpush1.msra.mxu0 %v40
    %86 = vmatprep.subr.mxu0 %v43
    %87 = vmatpush1.msra.mxu0 %v42
    %88 = vmatprep.subr.mxu0 %v45
    %89 = vmatpush1.msra.mxu0 %v44
    %90 = vmatprep.subr.mxu0 %v47
    %91 = vmatpush1.msra.mxu0 %v46
    %92 = vmatprep.subr.mxu0 %v49
    %93 = vmatpush1.msra.mxu0 %v48
    %94 = vmatprep.subr.mxu0 %v51
    %95 = vmatpush1.msra.mxu0 %v50
    %96 = vmatprep.subr.mxu0 %v53
    %97 = vmatpush1.msra.mxu0 %v52
    %98 = vmatprep.subr.mxu0 %v55
    %99 = vmatpush1.msra.mxu0 %v54
    %100 = vmatprep.subr.mxu0 %v57
    %101 = vmatpush1.msra.mxu0 %v56
    %102 = vmatprep.subr.mxu0 %v59
    %103 = vmatpush1.msra.mxu0 %v58
    %104 = vmatprep.subr.mxu0 %v61
    %105 = vmatpush1.msra.mxu0 %v60
    %106 = vmatprep.subr.mxu0 0.0
    %107 = vmatpush1.msra.mxu0 0.0
    %108 = vmatprep.subr.mxu0 0.0
    %109 = vmatpush1.msra.mxu0 0.0
    %110 = vmatprep.subr.mxu0 0.0
    %111 = vmatpush1.msra.mxu0 0.0
    %112 = vmatprep.subr.mxu0 0.0
    %113 = vmatpush1.msra.mxu0 0.0
    %114 = vmatprep.subr.mxu0 0.0
    %115 = vmatpush1.msra.mxu0 0.0
    %116 = vmatprep.subr.mxu0 0.0
    %117 = vmatpush1.msra.mxu0 0.0
    %118 = vmatprep.subr.mxu0 0.0
    %119 = vmatpush1.msra.mxu0 0.0
    %120 = vmatprep.subr.mxu0 0.0
    %121 = vmatpush1.msra.mxu0 0.0
    %122 = vmatprep.subr.mxu0 0.0
    %123 = vmatpush1.msra.mxu0 0.0
    %124 = vmatprep.subr.mxu0 0.0
    %125 = vmatpush1.msra.mxu0 0.0
    %126 = vmatprep.subr.mxu0 0.0
    %127 = vmatpush1.msra.mxu0 0.0
    %128 = vmatprep.subr.mxu0 0.0
    %129 = vmatpush1.msra.mxu0 0.0
    %130 = vmatprep.subr.mxu0 0.0
    %131 = vmatpush1.msra.mxu0 0.0
    %132 = vmatprep.subr.mxu0 0.0
    %133 = vmatpush1.msra.mxu0 0.0
    %134 = vmatprep.subr.mxu0 0.0
    %135 = vmatpush1.msra.mxu0 0.0
    %136 = vmatprep.subr.mxu0 0.0
    %137 = vmatpush1.msra.mxu0 0.0
    %138 = vmatprep.mubr.f32.mxu0 0.0
    %139 = vmatmul.mubr.f32.gmra.mrb[0].mxu0 %v28
    %v140 = vpop.f32.mrb[0].mxu0
    %v141 = vadd.f32 %v67, %v140
    %v142 = vpop.f32.mrb[0].mxu0
    %v143 = vadd.f32 %v71, %v142
    %144 = vmatprep.mubr.f32.mxu0 0.0
    %145 = vmatmul.mubr.f32.gmra.mrb[0].mxu0 %v29
    %v146 = vpop.f32.mrb[0].mxu0
    %v147 = vadd.f32 %v67, %v146
    %v148 = vpop.f32.mrb[0].mxu0
    %v149 = vadd.f32 %v71, %v148
    %150 = vdwg.mxu0
    %151 = vst [vmem:[%s3] sm:$0xff] %v141
    %152 = vst [vmem:[%s3 + $0x8] sm:$0xff] %v143
    %153 = vst [vmem:[%s3 + $0x10] sm:$0xff] %v147
    %154 = vst [vmem:[%s3 + $0x18] sm:$0xff] %v149
    // Predicated region
    $region18: #{bert_pretraining_heads.3} parent=1 // pred_check
      _
    $region19: #{bert_pretraining_heads.3} parent=1 // pred_check_branch
      %156 = sbr.rel (0) target = $region21
    $region20: #{bert_pretraining_heads.3} parent=1 // pred_region
      _
    $region21: #{bert_pretraining_heads.3} parent=1 // pred_fallthru
      _
    // Predicated region
    $region22: #{bert_pretraining_heads.3} parent=1 // pred_check
      _
    $region23: #{bert_pretraining_heads.3} parent=1 // pred_check_branch
      %158 = sbr.rel (0) target = $region25
    $region24: #{bert_pretraining_heads.3} parent=1 // pred_region
      _
    $region25: #{bert_pretraining_heads.3} parent=1 // pred_fallthru
      _
    %159 = vsyncpa [#allocation3], 1

</llo_original>
